<compile_context>
chip_gen: v6e
topology: v6e:2x2x1
jax: 0.10.0
libtpu: 0.0.40
codegen_flags: <defaults>
</compile_context>

<pallas_src>
import jax
import jax.numpy as jnp
from jax.experimental import pallas as pl
from jax.experimental.pallas import tpu as pltpu

LN_EPS = 1e-5   # torch.nn.LayerNorm default
LANE = 128      # lane width for the lane-dense final projection


def output_layer_kernel(x_ref, w1_ref, b1_ref, g_ref, beta_ref,
                        w2_ref, b2_ref, w3_ref, b3_ref, o_ref, h1_acc):
    k = pl.program_id(1)

    # ---- K-tiled first matmul: x @ w1 accumulated in f32 scratch ----------
    @pl.when(k == 0)
    def _():
        h1_acc[...] = jnp.zeros_like(h1_acc)

    # bf16 x bf16 on the MXU, f32 accumulation.
    h1_acc[...] += jnp.dot(x_ref[...], w1_ref[...],
                           preferred_element_type=jnp.float32)

    # ---- Epilogue: LN -> Linear -> ReLU -> Linear, only on the last K step -
    @pl.when(k == pl.num_programs(1) - 1)
    def _():
        h1 = h1_acc[...] + b1_ref[...]                       # [TB, H2] f32

        # LayerNorm (two-pass variance, f32; affine folded into one FMA).
        mu = jnp.mean(h1, axis=-1, keepdims=True)
        d = h1 - mu
        var = jnp.mean(d * d, axis=-1, keepdims=True)
        scale = g_ref[...] * jax.lax.rsqrt(var + LN_EPS)     # gamma * 1/std
        ln = d * scale + beta_ref[...]

        # Linear(H2 -> H4) + ReLU (bf16 MXU, f32 accumulate / bias / relu).
        h2 = jnp.dot(ln.astype(jnp.bfloat16), w2_ref[...],
                     preferred_element_type=jnp.float32) + b2_ref[...]
        h2 = jnp.maximum(h2, 0.0)

        # Linear(H4 -> 1), lane-padded to 128 output columns (unmasked vst);
        # column 0 carries the real output.
        o_ref[...] = jnp.dot(h2.astype(jnp.bfloat16), w3_ref[...],
                             preferred_element_type=jnp.float32) + b3_ref[...]


def _choose_tiles(B, H, H2, tile_b=None, tile_k=None):
    # Batch tile: biggest candidate (fills the 256x256 MXU on v6e/v7x) that
    # divides B; otherwise the largest candidate <= B (partial last block).
    if tile_b is None:
        if B <= 8:
            tile_b = B
        else:
            cands = (512, 256, 128, 64, 32, 16, 8)
            divs = [t for t in cands if B % t == 0]
            tile_b = divs[0] if divs else max(t for t in cands if t <= B)

    # K tile: keep w1 fully resident when it comfortably fits (<= 24 MiB bf16),
    # otherwise stream it in 128-multiple chunks (v7x's 64 MiB VMEM).
    if tile_k is None:
        if H % 128 != 0 or H * H2 * 2 <= 24 * 1024 * 1024:
            tile_k = H
        else:
            tile_k = 512
            while H % tile_k != 0:
                tile_k //= 2
    return tile_b, tile_k


def _vmem_limit_bytes(tile_b, tile_k, H, H2, H4, n_k):
    w1_bufs = 1 if n_k == 1 else 2
    resident = (H2 * H4 * 2 + H4 * LANE * 2            # w2, w3p (bf16)
                + 4 * (3 * H2 + H4 + LANE))            # b1, gamma, beta, b2, b3p
    w1 = w1_bufs * tile_k * H2 * 2                     # bf16
    x_t = 2 * tile_b * tile_k * 2                      # bf16, double-buffered
    out_t = 2 * tile_b * LANE * 4                      # f32, double-buffered
    acc = tile_b * H2 * 4                              # f32 scratch
    interm = 4 * tile_b * H2 * 4 + 2 * tile_b * H4 * 4  # h1/d/ln/h2 working set
    est = resident + w1 + x_t + out_t + acc + interm
    return min(64 << 20, max(16 << 20, 2 * est + (2 << 20)))


def output_layer(x, params, *, tile_b=None, tile_k=None):
    """x: [B, H] float32 -> [B, 1] float32 (matmuls in bf16, f32 accumulate)."""
    B, H = x.shape
    H2 = params["w1"].shape[1]
    H4 = params["w2"].shape[1]

    tile_b, tile_k = _choose_tiles(B, H, H2, tile_b, tile_k)
    assert tile_k == H or (H % tile_k == 0 and tile_k % 128 == 0)
    n_k = H // tile_k
    n_b = pl.cdiv(B, tile_b)   # partial last block handled by Pallas (rows independent)

    # bf16 matmul operands (halves weight DMA / VMEM); small params stay f32.
    x_bf = x.astype(jnp.bfloat16)
    w1 = params["w1"].astype(jnp.bfloat16)
    w2 = params["w2"].astype(jnp.bfloat16)
    w3p = jnp.pad(params["w3"],
                  ((0, 0), (0, LANE - params["w3"].shape[1]))).astype(jnp.bfloat16)
    b3p = jnp.pad(params["b3"], ((0, 0), (0, LANE - params["b3"].shape[1])))

    # Constant-index (resident) operands are single-buffered: their block index
    # never changes, so double-buffering would only waste VMEM.
    one_buf = pl.Buffered(1)
    w1_mode = pl.Buffered(1) if n_k == 1 else pl.Buffered(2)

    const = lambda i, k: (0, 0)        # resident weights/biases, DMA'd once
    x_map = lambda i, k: (i, k)        # streamed activation tile
    w1_map = lambda i, k: (k, 0)       # streamed (or resident when n_k == 1)
    o_map = lambda i, k: (i, 0)        # same block across k -> written at last k

    out = pl.pallas_call(
        output_layer_kernel,
        out_shape=jax.ShapeDtypeStruct((B, LANE), jnp.float32),
        grid_spec=pltpu.PrefetchScalarGridSpec(
            num_scalar_prefetch=0,
            grid=(n_b, n_k),
            in_specs=[
                pl.BlockSpec((tile_b, tile_k), x_map),                       # x
                pl.BlockSpec((tile_k, H2), w1_map, pipeline_mode=w1_mode),   # w1
                pl.BlockSpec((1, H2), const, pipeline_mode=one_buf),         # b1
                pl.BlockSpec((1, H2), const, pipeline_mode=one_buf),         # gamma
                pl.BlockSpec((1, H2), const, pipeline_mode=one_buf),         # beta
                pl.BlockSpec((H2, H4), const, pipeline_mode=one_buf),        # w2
                pl.BlockSpec((1, H4), const, pipeline_mode=one_buf),         # b2
                pl.BlockSpec((H4, LANE), const, pipeline_mode=one_buf),      # w3 (padded)
                pl.BlockSpec((1, LANE), const, pipeline_mode=one_buf),       # b3 (padded)
            ],
            out_specs=pl.BlockSpec((tile_b, LANE), o_map),
            scratch_shapes=[pltpu.VMEM((tile_b, H2), jnp.float32)],          # h1 accumulator
        ),
        compiler_params=pltpu.CompilerParams(
            dimension_semantics=("parallel", "arbitrary"),   # batch megacore, K reduction
            vmem_limit_bytes=_vmem_limit_bytes(tile_b, tile_k, H, H2, H4, n_k),
        ),
    )(x_bf, w1, params["b1"], params["gamma"], params["beta"],
      w2, params["b2"], w3p, b3p)

    return out[:, :1]


def init_params(key, hidden_dim):
    h2, h4 = hidden_dim // 2, hidden_dim // 4
    ks = jax.random.split(key, 6)

    def lin(kw, kb, fan_in, fan_out):
        # PyTorch-style uniform(-1/sqrt(fan_in), 1/sqrt(fan_in)); stored transposed [in, out].
        bound = 1.0 / jnp.sqrt(fan_in)
        w = jax.random.uniform(kw, (fan_in, fan_out), jnp.float32, -bound, bound)
        b = jax.random.uniform(kb, (1, fan_out), jnp.float32, -bound, bound)
        return w, b

    w1, b1 = lin(ks[0], ks[1], hidden_dim, h2)
    w2, b2 = lin(ks[2], ks[3], h2, h4)
    w3, b3 = lin(ks[4], ks[5], h4, 1)
    return {
        "w1": w1, "b1": b1,
        "gamma": jnp.ones((1, h2), jnp.float32),
        "beta": jnp.zeros((1, h2), jnp.float32),
        "w2": w2, "b2": b2,
        "w3": w3, "b3": b3,
    }


def reference(x, p):
    h1 = x @ p["w1"] + p["b1"]
    mu = jnp.mean(h1, axis=-1, keepdims=True)
    var = jnp.mean((h1 - mu) ** 2, axis=-1, keepdims=True)
    ln = (h1 - mu) / jnp.sqrt(var + LN_EPS) * p["gamma"] + p["beta"]
    h2 = jnp.maximum(ln @ p["w2"] + p["b2"], 0.0)
    return h2 @ p["w3"] + p["b3"]


if __name__ == "__main__":
    key = jax.random.PRNGKey(0)
    k1, k2, k3, k4 = jax.random.split(key, 4)

    # Test 1: small shapes, fully-resident w1 (single K block).
    batch, hidden_dim = 32, 32
    x = jax.random.normal(k1, (batch, hidden_dim), jnp.float32)
    params = init_params(k2, hidden_dim)
    out = jax.block_until_ready(output_layer(x, params))
    ref = reference(x, params)
    assert out.shape == (batch, 1)
    # bf16 matmuls -> loosened tolerance vs the f32 reference.
    assert jnp.allclose(out, ref, atol=1e-1, rtol=1e-1), \
        float(jnp.max(jnp.abs(out - ref)))

    # Test 2: exercise the K-tiled accumulator path (n_k = 2) at a still-small size.
    batch2, hidden_dim2 = 16, 256
    x2 = jax.random.normal(k3, (batch2, hidden_dim2), jnp.float32)
    params2 = init_params(k4, hidden_dim2)
    out2 = jax.block_until_ready(output_layer(x2, params2, tile_k=128))
    ref2 = reference(x2, params2)
    assert out2.shape == (batch2, 1)
    assert jnp.allclose(out2, ref2, atol=1e-1, rtol=1e-1), \
        float(jnp.max(jnp.abs(out2 - ref2)))

    print("KERNEL_OK")
</pallas_src>

<mosaic_0001>
module attributes {stable_mosaic.version = 11 : i64} {
  func.func @output_layer_kernel(%arg0: i32, %arg1: i32, %arg2: memref<32x32xbf16, #tpu.memory_space<vmem>>, %arg3: memref<32x16xbf16, #tpu.memory_space<vmem>>, %arg4: memref<1x16xf32, #tpu.memory_space<vmem>>, %arg5: memref<1x16xf32, #tpu.memory_space<vmem>>, %arg6: memref<1x16xf32, #tpu.memory_space<vmem>>, %arg7: memref<16x8xbf16, #tpu.memory_space<vmem>>, %arg8: memref<1x8xf32, #tpu.memory_space<vmem>>, %arg9: memref<8x128xbf16, #tpu.memory_space<vmem>>, %arg10: memref<1x128xf32, #tpu.memory_space<vmem>>, %arg11: memref<32x128xf32, #tpu.memory_space<vmem>>, %arg12: memref<32x16xf32, #tpu.memory_space<vmem>>) attributes {dimension_semantics = [#tpu.dimension_semantics<parallel>, #tpu.dimension_semantics<arbitrary>], iteration_bounds = array<i64: 1, 1>, scalar_prefetch = 0 : i64, scratch_operands = 1 : i64, tpu.core_type = #tpu.core_type<tc>, window_params = [{transform_indices = @transform_0, window_bounds = array<i64: 32, 32>}, {pipeline_mode = #tpu.pipeline_mode<synchronous>, transform_indices = @transform_1, window_bounds = array<i64: 32, 16>}, {pipeline_mode = #tpu.pipeline_mode<synchronous>, transform_indices = @transform_2, window_bounds = array<i64: 1, 16>}, {pipeline_mode = #tpu.pipeline_mode<synchronous>, transform_indices = @transform_3, window_bounds = array<i64: 1, 16>}, {pipeline_mode = #tpu.pipeline_mode<synchronous>, transform_indices = @transform_4, window_bounds = array<i64: 1, 16>}, {pipeline_mode = #tpu.pipeline_mode<synchronous>, transform_indices = @transform_5, window_bounds = array<i64: 16, 8>}, {pipeline_mode = #tpu.pipeline_mode<synchronous>, transform_indices = @transform_6, window_bounds = array<i64: 1, 8>}, {pipeline_mode = #tpu.pipeline_mode<synchronous>, transform_indices = @transform_7, window_bounds = array<i64: 8, 128>}, {pipeline_mode = #tpu.pipeline_mode<synchronous>, transform_indices = @transform_8, window_bounds = array<i64: 1, 128>}, {transform_indices = @transform_9, window_bounds = array<i64: 32, 128>}]} {
    %c0_i32 = arith.constant 0 : i32
    %0 = arith.cmpi eq, %arg1, %c0_i32 : i32
    %1 = arith.extui %0 : i1 to i32
    %c0_i32_0 = arith.constant 0 : i32
    %2 = arith.cmpi ne, %1, %c0_i32_0 : i32
    scf.if %2 {
      %cst_10 = arith.constant 0.000000e+00 : f32
      %12 = vector.broadcast %cst_10 : f32 to vector<32x16xf32>
      %c0_11 = arith.constant 0 : index
      %c0_12 = arith.constant 0 : index
      %13 = vector.load %arg12[%c0_11, %c0_12] : memref<32x16xf32, #tpu.memory_space<vmem>>, vector<32x16xf32>
      tpu.vector_store %arg12[%c0_11, %c0_12], %12 {strides = array<i32>} : memref<32x16xf32, #tpu.memory_space<vmem>>, vector<32x16xf32>,
    } else {
    }
    %c0 = arith.constant 0 : index
    %c0_1 = arith.constant 0 : index
    %3 = vector.load %arg12[%c0, %c0_1] : memref<32x16xf32, #tpu.memory_space<vmem>>, vector<32x16xf32>
    %c0_2 = arith.constant 0 : index
    %c0_3 = arith.constant 0 : index
    %4 = vector.load %arg2[%c0_2, %c0_3] : memref<32x32xbf16, #tpu.memory_space<vmem>>, vector<32x32xbf16>
    %c0_4 = arith.constant 0 : index
    %c0_5 = arith.constant 0 : index
    %5 = vector.load %arg3[%c0_4, %c0_5] : memref<32x16xbf16, #tpu.memory_space<vmem>>, vector<32x16xbf16>
    %cst = arith.constant dense<0.000000e+00> : vector<32x16xf32>
    %6 = tpu.matmul %4, %5, %cst {dimension_numbers = #tpu.dot_dimension_numbers<[1], [0], [0], [1], [0, 0, 1, 1], [], []>} : vector<32x32xbf16>, vector<32x16xbf16>, vector<32x16xf32> -> vector<32x16xf32>
    %7 = arith.addf %3, %6 : vector<32x16xf32>
    %c0_6 = arith.constant 0 : index
    %c0_7 = arith.constant 0 : index
    %8 = vector.load %arg12[%c0_6, %c0_7] : memref<32x16xf32, #tpu.memory_space<vmem>>, vector<32x16xf32>
    tpu.vector_store %arg12[%c0_6, %c0_7], %7 {strides = array<i32>} : memref<32x16xf32, #tpu.memory_space<vmem>>, vector<32x16xf32>,
    %c0_i32_8 = arith.constant 0 : i32
    %9 = arith.cmpi eq, %arg1, %c0_i32_8 : i32
    %10 = arith.extui %9 : i1 to i32
    %c0_i32_9 = arith.constant 0 : i32
    %11 = arith.cmpi ne, %10, %c0_i32_9 : i32
    scf.if %11 {
      %c0_10 = arith.constant 0 : index
      %c0_11 = arith.constant 0 : index
      %12 = vector.load %arg12[%c0_10, %c0_11] : memref<32x16xf32, #tpu.memory_space<vmem>>, vector<32x16xf32>
      %c0_12 = arith.constant 0 : index
      %c0_13 = arith.constant 0 : index
      %13 = vector.load %arg4[%c0_12, %c0_13] : memref<1x16xf32, #tpu.memory_space<vmem>>, vector<1x16xf32>
      %14 = vector.broadcast %13 : vector<1x16xf32> to vector<32x16xf32>
      %15 = arith.addf %12, %14 : vector<32x16xf32>
      %cst_14 = arith.constant dense<0.000000e+00> : vector<32xf32>
      %16 = vector.multi_reduction <add>, %15, %cst_14 [1] : vector<32x16xf32> to vector<32xf32>
      %17 = vector.shape_cast %16 : vector<32xf32> to vector<32x1xf32>
      %cst_15 = arith.constant 1.600000e+01 : f32
      %18 = vector.broadcast %cst_15 : f32 to vector<32x1xf32>
      %19 = arith.divf %17, %18 : vector<32x1xf32>
      %20 = vector.broadcast %19 : vector<32x1xf32> to vector<32x16xf32>
      %21 = arith.subf %15, %20 : vector<32x16xf32>
      %22 = arith.mulf %21, %21 : vector<32x16xf32>
      %cst_16 = arith.constant dense<0.000000e+00> : vector<32xf32>
      %23 = vector.multi_reduction <add>, %22, %cst_16 [1] : vector<32x16xf32> to vector<32xf32>
      %24 = vector.shape_cast %23 : vector<32xf32> to vector<32x1xf32>
      %cst_17 = arith.constant 1.600000e+01 : f32
      %25 = vector.broadcast %cst_17 : f32 to vector<32x1xf32>
      %26 = arith.divf %24, %25 : vector<32x1xf32>
      %c0_18 = arith.constant 0 : index
      %c0_19 = arith.constant 0 : index
      %27 = vector.load %arg5[%c0_18, %c0_19] : memref<1x16xf32, #tpu.memory_space<vmem>>, vector<1x16xf32>
      %cst_20 = arith.constant 9.99999974E-6 : f32
      %28 = vector.broadcast %cst_20 : f32 to vector<32x1xf32>
      %29 = arith.addf %26, %28 : vector<32x1xf32>
      %30 = math.rsqrt %29 : vector<32x1xf32>
      %31 = vector.broadcast %27 : vector<1x16xf32> to vector<32x16xf32>
      %32 = vector.broadcast %30 : vector<32x1xf32> to vector<32x16xf32>
      %33 = arith.mulf %31, %32 : vector<32x16xf32>
      %34 = arith.mulf %21, %33 : vector<32x16xf32>
      %c0_21 = arith.constant 0 : index
      %c0_22 = arith.constant 0 : index
      %35 = vector.load %arg6[%c0_21, %c0_22] : memref<1x16xf32, #tpu.memory_space<vmem>>, vector<1x16xf32>
      %36 = vector.broadcast %35 : vector<1x16xf32> to vector<32x16xf32>
      %37 = arith.addf %34, %36 : vector<32x16xf32>
      %38 = arith.truncf %37 : vector<32x16xf32> to vector<32x16xbf16>
      %c0_23 = arith.constant 0 : index
      %c0_24 = arith.constant 0 : index
      %39 = vector.load %arg7[%c0_23, %c0_24] : memref<16x8xbf16, #tpu.memory_space<vmem>>, vector<16x8xbf16>
      %cst_25 = arith.constant dense<0.000000e+00> : vector<32x8xf32>
      %40 = tpu.matmul %38, %39, %cst_25 {dimension_numbers = #tpu.dot_dimension_numbers<[1], [0], [0], [1], [0, 0, 1, 1], [], []>} : vector<32x16xbf16>, vector<16x8xbf16>, vector<32x8xf32> -> vector<32x8xf32>
      %c0_26 = arith.constant 0 : index
      %c0_27 = arith.constant 0 : index
      %41 = vector.load %arg8[%c0_26, %c0_27] : memref<1x8xf32, #tpu.memory_space<vmem>>, vector<1x8xf32>
      %42 = vector.broadcast %41 : vector<1x8xf32> to vector<32x8xf32>
      %43 = arith.addf %40, %42 : vector<32x8xf32>
      %cst_28 = arith.constant 0.000000e+00 : f32
      %44 = vector.broadcast %cst_28 : f32 to vector<32x8xf32>
      %45 = arith.maximumf %43, %44 : vector<32x8xf32>
      %46 = arith.truncf %45 : vector<32x8xf32> to vector<32x8xbf16>
      %c0_29 = arith.constant 0 : index
      %c0_30 = arith.constant 0 : index
      %47 = vector.load %arg9[%c0_29, %c0_30] : memref<8x128xbf16, #tpu.memory_space<vmem>>, vector<8x128xbf16>
      %cst_31 = arith.constant dense<0.000000e+00> : vector<32x128xf32>
      %48 = tpu.matmul %46, %47, %cst_31 {dimension_numbers = #tpu.dot_dimension_numbers<[1], [0], [0], [1], [0, 0, 1, 1], [], []>} : vector<32x8xbf16>, vector<8x128xbf16>, vector<32x128xf32> -> vector<32x128xf32>
      %c0_32 = arith.constant 0 : index
      %c0_33 = arith.constant 0 : index
      %49 = vector.load %arg10[%c0_32, %c0_33] : memref<1x128xf32, #tpu.memory_space<vmem>>, vector<1x128xf32>
      %50 = vector.broadcast %49 : vector<1x128xf32> to vector<32x128xf32>
      %51 = arith.addf %48, %50 : vector<32x128xf32>
      %c0_34 = arith.constant 0 : index
      %c0_35 = arith.constant 0 : index
      %52 = vector.load %arg11[%c0_34, %c0_35] : memref<32x128xf32, #tpu.memory_space<vmem>>, vector<32x128xf32>
      tpu.vector_store %arg11[%c0_34, %c0_35], %51 {strides = array<i32>} : memref<32x128xf32, #tpu.memory_space<vmem>>, vector<32x128xf32>,
    } else {
    }
    return
  }
  func.func @transform_0(%arg0: i32, %arg1: i32) -> (i32, i32) {
    %c0_i32 = arith.constant 0 : i32
    return %arg0, %arg1 : i32, i32
  }
  func.func @transform_1(%arg0: i32, %arg1: i32) -> (i32, i32) {
    %c0_i32 = arith.constant 0 : i32
    %c0_i32_0 = arith.constant 0 : i32
    return %arg1, %c0_i32 : i32, i32
  }
  func.func @transform_2(%arg0: i32, %arg1: i32) -> (i32, i32) {
    %c0_i32 = arith.constant 0 : i32
    %c0_i32_0 = arith.constant 0 : i32
    %c0_i32_1 = arith.constant 0 : i32
    return %c0_i32, %c0_i32_0 : i32, i32
  }
  func.func @transform_3(%arg0: i32, %arg1: i32) -> (i32, i32) {
    %c0_i32 = arith.constant 0 : i32
    %c0_i32_0 = arith.constant 0 : i32
    %c0_i32_1 = arith.constant 0 : i32
    return %c0_i32, %c0_i32_0 : i32, i32
  }
  func.func @transform_4(%arg0: i32, %arg1: i32) -> (i32, i32) {
    %c0_i32 = arith.constant 0 : i32
    %c0_i32_0 = arith.constant 0 : i32
    %c0_i32_1 = arith.constant 0 : i32
    return %c0_i32, %c0_i32_0 : i32, i32
  }
  func.func @transform_5(%arg0: i32, %arg1: i32) -> (i32, i32) {
    %c0_i32 = arith.constant 0 : i32
    %c0_i32_0 = arith.constant 0 : i32
    %c0_i32_1 = arith.constant 0 : i32
    return %c0_i32, %c0_i32_0 : i32, i32
  }
  func.func @transform_6(%arg0: i32, %arg1: i32) -> (i32, i32) {
    %c0_i32 = arith.constant 0 : i32
    %c0_i32_0 = arith.constant 0 : i32
    %c0_i32_1 = arith.constant 0 : i32
    return %c0_i32, %c0_i32_0 : i32, i32
  }
  func.func @transform_7(%arg0: i32, %arg1: i32) -> (i32, i32) {
    %c0_i32 = arith.constant 0 : i32
    %c0_i32_0 = arith.constant 0 : i32
    %c0_i32_1 = arith.constant 0 : i32
    return %c0_i32, %c0_i32_0 : i32, i32
  }
  func.func @transform_8(%arg0: i32, %arg1: i32) -> (i32, i32) {
    %c0_i32 = arith.constant 0 : i32
    %c0_i32_0 = arith.constant 0 : i32
    %c0_i32_1 = arith.constant 0 : i32
    return %c0_i32, %c0_i32_0 : i32, i32
  }
  func.func @transform_9(%arg0: i32, %arg1: i32) -> (i32, i32) {
    %c0_i32 = arith.constant 0 : i32
    %c0_i32_0 = arith.constant 0 : i32
    return %arg0, %c0_i32 : i32, i32
  }
}

</mosaic_0001>

<llo_original>
// kernel: tpu_custom_call.1
$region0: #{tpu_custom_call.1}
  #allocation0 [shape = 'u32[]', space=smem, size = 0x4, offset = 0x4, fixed_abs, tag = 'smem constant byte address 0x4 - core index']
  #allocation1 [shape = 'u32[144,128]{1,0:T(1,128)}', space=vmem, size = 0x12000, scoped, tag = 'internal scratch']
  #allocation2 [shape = 'f32[32,16]{1,0:T(8,128)}', space=vmem, size = 0x4000, scoped, tag = 'scratch operand']
  %s0 = inlined_call_operand.vmem [shape: bf16[32,32], index: 0, kind: input, shape index: {}]
  %s1 = inlined_call_operand.vmem [shape: bf16[32,16], index: 1, kind: input, shape index: {}]
  %s2 = inlined_call_operand.vmem [shape: f32[1,16], index: 2, kind: input, shape index: {}]
  %s3 = inlined_call_operand.vmem [shape: f32[1,16], index: 3, kind: input, shape index: {}]
  %s4 = inlined_call_operand.vmem [shape: f32[1,16], index: 4, kind: input, shape index: {}]
  %s5 = inlined_call_operand.vmem [shape: bf16[16,8], index: 5, kind: input, shape index: {}]
  %s6 = inlined_call_operand.vmem [shape: f32[1,8], index: 6, kind: input, shape index: {}]
  %s7 = inlined_call_operand.vmem [shape: bf16[8,128], index: 7, kind: input, shape index: {}]
  %s8 = inlined_call_operand.vmem [shape: f32[1,128], index: 8, kind: input, shape index: {}]
  %s9 = inlined_call_operand.hbm [shape: f32[32,128], index: 9, kind: output, shape index: {}]
  %s10 = sld [smem:[#allocation0]]
  $region54: #{tpu_custom_call.1} parent=0
    _
  %s12 = ssub.s32 1, %s10
  %s13 = scalar_select 0, %s12, %s10
  $region1: #{tpu_custom_call.1} parent=0
    #allocation3 [shape = 'u8[16384]{0}', space=vmem, size = 0x4000, scoped, tag = 'output window, operand 0, single buffered']
    #allocation4 [shape = 's32[1]{0}', space=sflag, size = 0x4, scoped, tag = 'scoped memory for tpu_custom_call.1']
    %14 = vsyncpa [#allocation4], 0
    // Predicated region
    $region2: #{tpu_custom_call.1} parent=1 // pred_check
      _
    $region3: #{tpu_custom_call.1} parent=1 // pred_check_branch
      %16 = sbr.rel (0) target = $region5
    $region4: #{tpu_custom_call.1} parent=1 // pred_region
      _
    $region5: #{tpu_custom_call.1} parent=1 // pred_fallthru
      _
    // Predicated region
    $region6: #{tpu_custom_call.1} parent=1 // pred_check
      _
    $region7: #{tpu_custom_call.1} parent=1 // pred_check_branch
      %18 = sbr.rel (0) target = $region9
    $region8: #{tpu_custom_call.1} parent=1 // pred_region
      _
    $region9: #{tpu_custom_call.1} parent=1 // pred_fallthru
      _
    // Predicated region
    $region10: #{tpu_custom_call.1} parent=1 // pred_check
      _
    $region11: #{tpu_custom_call.1} parent=1 // pred_check_branch
      %20 = sbr.rel (0) target = $region13
    $region12: #{tpu_custom_call.1} parent=1 // pred_region
      _
    $region13: #{tpu_custom_call.1} parent=1 // pred_fallthru
      _
    // Predicated region
    $region14: #{tpu_custom_call.1} parent=1 // pred_check
      _
    $region15: #{tpu_custom_call.1} parent=1 // pred_check_branch
      %22 = sbr.rel (0) target = $region17
    $region16: #{tpu_custom_call.1} parent=1 // pred_region
      _
    $region17: #{tpu_custom_call.1} parent=1 // pred_fallthru
      _
    // Predicated region
    $region18: #{tpu_custom_call.1} parent=1 // pred_check
      _
    $region19: #{tpu_custom_call.1} parent=1 // pred_check_branch
      %24 = sbr.rel (0) target = $region21
    $region20: #{tpu_custom_call.1} parent=1 // pred_region
      _
    $region21: #{tpu_custom_call.1} parent=1 // pred_fallthru
      _
    // Predicated region
    $region22: #{tpu_custom_call.1} parent=1 // pred_check
      _
    $region23: #{tpu_custom_call.1} parent=1 // pred_check_branch
      %26 = sbr.rel (0) target = $region25
    $region24: #{tpu_custom_call.1} parent=1 // pred_region
      _
    $region25: #{tpu_custom_call.1} parent=1 // pred_fallthru
      _
    // Predicated region
    $region26: #{tpu_custom_call.1} parent=1 // pred_check
      _
    $region27: #{tpu_custom_call.1} parent=1 // pred_check_branch
      %28 = sbr.rel (0) target = $region29
    $region28: #{tpu_custom_call.1} parent=1 // pred_region
      _
    $region29: #{tpu_custom_call.1} parent=1 // pred_fallthru
      _
    // Predicated region
    $region30: #{tpu_custom_call.1} parent=1 // pred_check
      _
    $region31: #{tpu_custom_call.1} parent=1 // pred_check_branch
      %30 = sbr.rel (0) target = $region33
    $region32: #{tpu_custom_call.1} parent=1 // pred_region
      _
    $region33: #{tpu_custom_call.1} parent=1 // pred_fallthru
      _
    // Predicated region
    $region34: #{tpu_custom_call.1} parent=1 // pred_check
      _
    $region35: #{tpu_custom_call.1} parent=1 // pred_check_branch
      %32 = sbr.rel (0) target = $region37
    $region36: #{tpu_custom_call.1} parent=1 // pred_region
      _
    $region37: #{tpu_custom_call.1} parent=1 // pred_fallthru
      _
    %p34 = scmp.eq.s32.totalorder 0, 0
    // Predicated region
    $region38: #{tpu_custom_call.1} parent=1 // pred_check
      %p35 = pneg %p34
    $region39: #{tpu_custom_call.1} parent=1 // pred_check_branch
      %37 = sbr.rel (%p35) target = $region41
    $region40: #{tpu_custom_call.1} parent=1 // pred_region
      %vm38 = vcmask 130048
      %39 = vst.msk [vmem:[#allocation2] sm:$0xff] %vm38, 0.0
      %40 = vst.msk [vmem:[#allocation2 + $0x8] sm:$0xff] %vm38, 0.0
      %41 = vst.msk [vmem:[#allocation2 + $0x10] sm:$0xff] %vm38, 0.0
      %42 = vst.msk [vmem:[#allocation2 + $0x18] sm:$0xff] %vm38, 0.0
    $region41: #{tpu_custom_call.1} parent=1 // pred_fallthru
      _
    %v43 = vld [vmem:[#allocation2] sm:$0xff]
    %v44 = vld [vmem:[#allocation2 + $0x8] sm:$0xff]
    %v45 = vld [vmem:[#allocation2 + $0x10] sm:$0xff]
    %v46 = vld [vmem:[#allocation2 + $0x18] sm:$0xff]
    %v47 = vld [vmem:[%s0] sm:$0xf]
    %v48 = vld [vmem:[%s0 + $0x4] sm:$0xf]
    %v49 = vld [vmem:[%s0 + $0x8] sm:$0xf]
    %v50 = vld [vmem:[%s0 + $0xc] sm:$0xf]
    %v51 = vld [vmem:[%s1] sm:$0xf]
    %v52 = vld [vmem:[%s1 + $0x4] sm:$0xf]
    %v53 = vld [vmem:[%s1 + $0x8] sm:$0xf]
    %v54 = vld [vmem:[%s1 + $0xc] sm:$0xf]
    %v59 = vunpack.c.l.b16 %v47
    %v60 = vunpack.c.l.b16 %v48
    %v61 = vunpack.c.l.b16 %v49
    %v62 = vunpack.c.l.b16 %v50
    %v63 = vpack.c.b16 %v60, %v59
    %v64 = vpack.c.b16 %v62, %v61
    %v69 = vunpack.c.l.b16 %v51
    %v70 = vunpack.c.l.b16 %v52
    %v71 = vunpack.c.l.b16 %v53
    %v72 = vunpack.c.l.b16 %v54
    %v73 = vpack.c.b16 %v70, %v69
    %v74 = vpack.c.b16 %v72, %v71
    %vm77 = vcmask 261120
    %v79 = vsel %vm77, %v63, 0
    %v82 = vsel %vm77, %v64, 0
    %84 = vmatprep.subr.bf16.mxu0 0
    %85 = vmatpush1.bf16.msra.mxu0 0
    %86 = vmatprep.subr.bf16.mxu0 0
    %87 = vmatpush1.bf16.msra.mxu0 0
    %88 = vmatprep.subr.bf16.mxu0 0
    %89 = vmatpush1.bf16.msra.mxu0 0
    %90 = vmatprep.subr.bf16.mxu0 0
    %91 = vmatpush1.bf16.msra.mxu0 0
    %92 = vmatprep.subr.bf16.mxu0 0
    %93 = vmatpush1.bf16.msra.mxu0 0
    %94 = vmatprep.subr.bf16.mxu0 0
    %95 = vmatpush1.bf16.msra.mxu0 0
    %96 = vmatprep.subr.bf16.mxu0 0
    %97 = vmatpush1.bf16.msra.mxu0 %v74
    %98 = vmatprep.subr.bf16.mxu0 0
    %99 = vmatpush1.bf16.msra.mxu0 %v73
    %100 = vmatprep.subr.bf16.mxu0 0
    %101 = vmatpush2.bf16.msra.mxu0 0
    %102 = vmatprep.subr.bf16.mxu0 0
    %103 = vmatpush2.bf16.msra.mxu0 0
    %104 = vmatprep.subr.bf16.mxu0 0
    %105 = vmatpush2.bf16.msra.mxu0 0
    %106 = vmatprep.subr.bf16.mxu0 0
    %107 = vmatpush2.bf16.msra.mxu0 0
    %108 = vmatprep.subr.bf16.mxu0 0
    %109 = vmatpush2.bf16.msra.mxu0 0
    %110 = vmatprep.subr.bf16.mxu0 0
    %111 = vmatpush2.bf16.msra.mxu0 0
    %112 = vmatprep.subr.bf16.mxu0 0
    %113 = vmatpush2.bf16.msra.mxu0 0
    %114 = vmatprep.subr.bf16.mxu0 0
    %115 = vmatpush2.bf16.msra.mxu0 0
    %116 = vmatprep.mubr.bf16.mxu0 0
    %117 = vmatmul.mubr.bf16.gmra.mxu0 %v79
    %v118 = vpop.f32.mrf.mxu0
    %v119 = vadd.f32 0.0, %v118
    %v120 = vpop.f32.mrf.mxu0
    %v121 = vpop.f32.mrf.mxu0
    %v122 = vadd.f32 0.0, %v121
    %v123 = vpop.f32.mrf.mxu0
    %124 = vmatprep.mubr.bf16.mxu0 0
    %125 = vmatmul.mubr.bf16.gmra.mxu0 %v82
    %v126 = vpop.f32.mrf.mxu0
    %v127 = vadd.f32 0.0, %v126
    %v128 = vpop.f32.mrf.mxu0
    %v129 = vpop.f32.mrf.mxu0
    %v130 = vadd.f32 0.0, %v129
    %v131 = vpop.f32.mrf.mxu0
    %132 = vdwg.mxu0
    %v133 = vadd.f32 %v43, %v119
    %v134 = vadd.f32 %v44, %v122
    %v135 = vadd.f32 %v45, %v127
    %v136 = vadd.f32 %v46, %v130
    %vm137 = vcmask 130048
    %138 = vst.msk [vmem:[#allocation2] sm:$0xff] %vm137, %v133
    %139 = vst.msk [vmem:[#allocation2 + $0x8] sm:$0xff] %vm137, %v134
    %140 = vst.msk [vmem:[#allocation2 + $0x10] sm:$0xff] %vm137, %v135
    %141 = vst.msk [vmem:[#allocation2 + $0x18] sm:$0xff] %vm137, %v136
    // Predicated region
    $region42: #{tpu_custom_call.1} parent=1 // pred_check
      %p142 = pneg %p34
    $region43: #{tpu_custom_call.1} parent=1 // pred_check_branch
      %144 = sbr.rel (%p142) target = $region45
    $region44: #{tpu_custom_call.1} parent=1 // pred_region
      %v145 = vld [vmem:[#allocation2] sm:$0xff]
      %v146 = vld [vmem:[#allocation2 + $0x8] sm:$0xff]
      %v147 = vld [vmem:[#allocation2 + $0x10] sm:$0xff]
      %v148 = vld [vmem:[#allocation2 + $0x18] sm:$0xff]
      %v149 = vld [vmem:[%s2] sm:$0x1]
      %v151 = vlaneseq
      %v152 = vshrl.u32 %v151, 7
      %v153 = vsub.s32 0, %v152
      %v154 = vrot.slane %v149, %v153
      %v156 = vadd.f32 %v145, %v154
      %v157 = vadd.f32 %v146, %v154
      %v158 = vadd.f32 %v147, %v154
      %v159 = vadd.f32 %v148, %v154
      %v160 = vsel %vm137, %v156, 0.0
      %161 = vadd.xlane.f32.xlu0 %v160
      %v162 = vpop.xlane.xlu0 %161
      %v163 = vsel %vm137, %v157, 0.0
      %164 = vadd.xlane.f32.xlu0 %v163
      %v165 = vpop.xlane.xlu0 %164
      %v166 = vsel %vm137, %v158, 0.0
      %167 = vadd.xlane.f32.xlu0 %v166
      %v168 = vpop.xlane.xlu0 %167
      %v169 = vsel %vm137, %v159, 0.0
      %170 = vadd.xlane.f32.xlu0 %v169
      %v171 = vpop.xlane.xlu0 %170
      %v172 = vrcp.pop 16.0
      %v173 = vmul.f32 %v162, %v172
      %v174 = vmul.f32 %v165, %v172
      %v175 = vmul.f32 %v168, %v172
      %v176 = vmul.f32 %v171, %v172
      %v177 = vsub.f32 %v156, %v173
      %v178 = vsub.f32 %v157, %v174
      %v179 = vsub.f32 %v158, %v175
      %v180 = vsub.f32 %v159, %v176
      %v181 = vmul.f32 %v177, %v177
      %v182 = vmul.f32 %v178, %v178
      %v183 = vmul.f32 %v179, %v179
      %v184 = vmul.f32 %v180, %v180
      %v185 = vsel %vm137, %v181, 0.0
      %186 = vadd.xlane.f32.xlu0 %v185
      %v187 = vpop.xlane.xlu0 %186
      %v188 = vsel %vm137, %v182, 0.0
      %189 = vadd.xlane.f32.xlu0 %v188
      %v190 = vpop.xlane.xlu0 %189
      %v191 = vsel %vm137, %v183, 0.0
      %192 = vadd.xlane.f32.xlu0 %v191
      %v193 = vpop.xlane.xlu0 %192
      %v194 = vsel %vm137, %v184, 0.0
      %195 = vadd.xlane.f32.xlu0 %v194
      %v196 = vpop.xlane.xlu0 %195
      %v197 = vmul.f32 %v187, %v172
      %v198 = vmul.f32 %v190, %v172
      %v199 = vmul.f32 %v193, %v172
      %v200 = vmul.f32 %v196, %v172
      %v201 = vld [vmem:[%s3] sm:$0x1]
      %v202 = vadd.f32 %v197, 1e-05
      %v203 = vadd.f32 %v198, 1e-05
      %v204 = vadd.f32 %v199, 1e-05
      %v205 = vadd.f32 %v200, 1e-05
      %v206 = vrsqrt.pop %v202
      %v207 = vrsqrt.pop %v203
      %v208 = vrsqrt.pop %v204
      %v209 = vrsqrt.pop %v205
      %v211 = vlaneseq
      %v212 = vshrl.u32 %v211, 7
      %v213 = vsub.s32 0, %v212
      %v214 = vrot.slane %v201, %v213
      %v216 = vmul.f32 %v214, %v206
      %v217 = vmul.f32 %v214, %v207
      %v218 = vmul.f32 %v214, %v208
      %v219 = vmul.f32 %v214, %v209
      %v220 = vmul.f32 %v177, %v216
      %v221 = vmul.f32 %v178, %v217
      %v222 = vmul.f32 %v179, %v218
      %v223 = vmul.f32 %v180, %v219
      %v224 = vld [vmem:[%s4] sm:$0x1]
      %v226 = vlaneseq
      %v227 = vshrl.u32 %v226, 7
      %v228 = vsub.s32 0, %v227
      %v229 = vrot.slane %v224, %v228
      %v231 = vadd.f32 %v220, %v229
      %v232 = vadd.f32 %v221, %v229
      %v233 = vadd.f32 %v222, %v229
      %v234 = vadd.f32 %v223, %v229
      %v235 = vpack.c.bf16 %v232, %v231
      %v236 = vpack.c.bf16 %v234, %v233
      %v237 = vld [vmem:[%s5] sm:$0xf]
      %v238 = vld [vmem:[%s5 + $0x4] sm:$0xf]
      %v239 = vld [vmem:[%s6] sm:$0x1]
      %v241 = vlaneseq
      %v242 = vshrl.u32 %v241, 7
      %v243 = vsub.s32 0, %v242
      %v244 = vrot.slane %v239, %v243
      %v248 = vunpack.c.l.b16 %v237
      %v249 = vunpack.c.l.b16 %v238
      %v250 = vpack.c.b16 %v249, %v248
      %v253 = vsel %vm137, %v235, 0
      %v256 = vsel %vm137, %v236, 0
      %258 = vmatprep.subr.bf16.mxu0 0
      %259 = vmatpush1.bf16.msra.mxu0 0
      %260 = vmatprep.subr.bf16.mxu0 0
      %261 = vmatpush1.bf16.msra.mxu0 0
      %262 = vmatprep.subr.bf16.mxu0 0
      %263 = vmatpush1.bf16.msra.mxu0 0
      %264 = vmatprep.subr.bf16.mxu0 0
      %265 = vmatpush1.bf16.msra.mxu0 0
      %266 = vmatprep.subr.bf16.mxu0 0
      %267 = vmatpush1.bf16.msra.mxu0 0
      %268 = vmatprep.subr.bf16.mxu0 0
      %269 = vmatpush1.bf16.msra.mxu0 0
      %270 = vmatprep.subr.bf16.mxu0 0
      %271 = vmatpush1.bf16.msra.mxu0 0
      %272 = vmatprep.subr.bf16.mxu0 0
      %273 = vmatpush1.bf16.msra.mxu0 %v250
      %274 = vmatprep.subr.bf16.mxu0 0
      %275 = vmatpush2.bf16.msra.mxu0 0
      %276 = vmatprep.subr.bf16.mxu0 0
      %277 = vmatpush2.bf16.msra.mxu0 0
      %278 = vmatprep.subr.bf16.mxu0 0
      %279 = vmatpush2.bf16.msra.mxu0 0
      %280 = vmatprep.subr.bf16.mxu0 0
      %281 = vmatpush2.bf16.msra.mxu0 0
      %282 = vmatprep.subr.bf16.mxu0 0
      %283 = vmatpush2.bf16.msra.mxu0 0
      %284 = vmatprep.subr.bf16.mxu0 0
      %285 = vmatpush2.bf16.msra.mxu0 0
      %286 = vmatprep.subr.bf16.mxu0 0
      %287 = vmatpush2.bf16.msra.mxu0 0
      %288 = vmatprep.subr.bf16.mxu0 0
      %289 = vmatpush2.bf16.msra.mxu0 0
      %290 = vmatprep.mubr.bf16.mxu0 0
      %291 = vmatmul.mubr.bf16.gmra.mxu0 %v253
      %v292 = vpop.f32.mrf.mxu0
      %v293 = vadd.f32 %v244, %v292
      %v294 = vpop.f32.mrf.mxu0
      %v295 = vpop.f32.mrf.mxu0
      %v296 = vadd.f32 %v244, %v295
      %v297 = vpop.f32.mrf.mxu0
      %298 = vmatprep.mubr.bf16.mxu0 0
      %299 = vmatmul.mubr.bf16.gmra.mxu0 %v256
      %v300 = vpop.f32.mrf.mxu0
      %v301 = vadd.f32 %v244, %v300
      %v302 = vpop.f32.mrf.mxu0
      %v303 = vpop.f32.mrf.mxu0
      %v304 = vadd.f32 %v244, %v303
      %v305 = vpop.f32.mrf.mxu0
      %306 = vdwg.mxu0
      %v307 = vmax.f32 %v293, 0.0
      %v308 = vmax.f32 %v296, 0.0
      %v309 = vmax.f32 %v301, 0.0
      %v310 = vmax.f32 %v304, 0.0
      %v311 = vpack.c.bf16 %v308, %v307
      %v312 = vpack.c.bf16 %v310, %v309
      %v313 = vld [vmem:[%s7] sm:$0xf]
      %v314 = vld [vmem:[%s8] sm:$0x1]
      %v316 = vlaneseq
      %v317 = vshrl.u32 %v316, 7
      %v318 = vsub.s32 0, %v317
      %v319 = vrot.slane %v314, %v318
      %vm321 = vcmask 64512
      %v323 = vsel %vm321, %v311, 0
      %v326 = vsel %vm321, %v312, 0
      %vm328 = vcmask 1043456
      %v330 = vsel %vm328, %v313, 0
      %332 = vmatprep.subr.bf16.mxu0 0
      %333 = vmatpush1.bf16.msra.mxu0 0
      %334 = vmatprep.subr.bf16.mxu0 0
      %335 = vmatpush1.bf16.msra.mxu0 0
      %336 = vmatprep.subr.bf16.mxu0 0
      %337 = vmatpush1.bf16.msra.mxu0 0
      %338 = vmatprep.subr.bf16.mxu0 0
      %339 = vmatpush1.bf16.msra.mxu0 0
      %340 = vmatprep.subr.bf16.mxu0 0
      %341 = vmatpush1.bf16.msra.mxu0 0
      %342 = vmatprep.subr.bf16.mxu0 0
      %343 = vmatpush1.bf16.msra.mxu0 0
      %344 = vmatprep.subr.bf16.mxu0 0
      %345 = vmatpush1.bf16.msra.mxu0 0
      %346 = vmatprep.subr.bf16.mxu0 0
      %347 = vmatpush1.bf16.msra.mxu0 %v330
      %348 = vmatprep.subr.bf16.mxu0 0
      %349 = vmatpush2.bf16.msra.mxu0 0
      %350 = vmatprep.subr.bf16.mxu0 0
      %351 = vmatpush2.bf16.msra.mxu0 0
      %352 = vmatprep.subr.bf16.mxu0 0
      %353 = vmatpush2.bf16.msra.mxu0 0
      %354 = vmatprep.subr.bf16.mxu0 0
      %355 = vmatpush2.bf16.msra.mxu0 0
      %356 = vmatprep.subr.bf16.mxu0 0
      %357 = vmatpush2.bf16.msra.mxu0 0
      %358 = vmatprep.subr.bf16.mxu0 0
      %359 = vmatpush2.bf16.msra.mxu0 0
      %360 = vmatprep.subr.bf16.mxu0 0
      %361 = vmatpush2.bf16.msra.mxu0 0
      %362 = vmatprep.subr.bf16.mxu0 0
      %363 = vmatpush2.bf16.msra.mxu0 0
      %364 = vmatprep.mubr.bf16.mxu0 0
      %365 = vmatmul.mubr.bf16.gmra.mxu0 %v323
      %v366 = vpop.f32.mrf.mxu0
      %v367 = vadd.f32 %v319, %v366
      %v368 = vpop.f32.mrf.mxu0
      %v369 = vpop.f32.mrf.mxu0
      %v370 = vadd.f32 %v319, %v369
      %v371 = vpop.f32.mrf.mxu0
      %372 = vmatprep.mubr.bf16.mxu0 0
      %373 = vmatmul.mubr.bf16.gmra.mxu0 %v326
      %v374 = vpop.f32.mrf.mxu0
      %v375 = vadd.f32 %v319, %v374
      %v376 = vpop.f32.mrf.mxu0
      %v377 = vpop.f32.mrf.mxu0
      %v378 = vadd.f32 %v319, %v377
      %v379 = vpop.f32.mrf.mxu0
      %380 = vdwg.mxu0
      %381 = vst [vmem:[#allocation3] sm:$0xff] %v367
      %382 = vst [vmem:[#allocation3 + $0x8] sm:$0xff] %v370
      %383 = vst [vmem:[#allocation3 + $0x10] sm:$0xff] %v375
      %384 = vst [vmem:[#allocation3 + $0x18] sm:$0xff] %v378
    $region45: #{tpu_custom_call.1} parent=1 // pred_fallthru
      _
    // Predicated region
    $region46: #{tpu_custom_call.1} parent=1 // pred_check
      _
    $region47: #{tpu_custom_call.1} parent=1 // pred_check_branch
      %386 = sbr.rel (0) target = $region49
    $region48: #{tpu_custom_call.1} parent=1 // pred_region
      %s388 = ssub.s32 512, 512
      %389 = vsyncadd [#allocation4], %s388
      %s390 = sshll.u32 [#allocation3], 4
      %s391 = int_to_ptr.vmem [resolvable:$true] %s390
      %396 = dma.vmem_to_hbm [thread:$0]  %s391, 512, %s9, [#allocation4], 128, 128, 8
    $region49: #{tpu_custom_call.1} parent=1 // pred_fallthru
      _
    // Predicated region
    $region50: #{tpu_custom_call.1} parent=1 // pred_check
      _
    $region51: #{tpu_custom_call.1} parent=1 // pred_check_branch
      %398 = sbr.rel (0) target = $region53
    $region52: #{tpu_custom_call.1} parent=1 // pred_region
      %399 = dma.done [#allocation4], 512
    $region53: #{tpu_custom_call.1} parent=1 // pred_fallthru
      _
    %400 = vsyncpa [#allocation4], 1

</llo_original>
